<compile_context>
chip_gen: v7x
topology: tpu7x:2x2x1
jax: 0.10.0
libtpu: 0.0.40
codegen_flags: <defaults>
</compile_context>

<pallas_src>
import functools

import jax
import jax.numpy as jnp
from jax.experimental import pallas as pl
from jax.experimental.pallas import tpu as pltpu  # noqa: F401  (TPU backend; params not needed at this size)

BN_EPS = 1e-5
MXU_DTYPE = jnp.bfloat16   # MXU-native input dtype; accumulation is always f32.
LANE = 128                 # TPU lane width: feature dims are padded to multiples of this.


def _round_up(x, m):
    return ((x + m - 1) // m) * m


def _full_spec(shape):
    # Whole-array block, single grid point (block == array satisfies TPU tiling).
    return pl.BlockSpec(shape, lambda: tuple(0 for _ in shape))


def _build_fused_kernel(num_layers):
    """Kernel computing the entire StudentNet forward with VMEM-resident activations.

    Ref order: x, [w_l, gamma_l, beta_l] * (num_layers-1), w_last, b_last, out.
    """
    num_hidden = num_layers - 1

    def kernel(*refs):
        x_ref, o_ref = refs[0], refs[-1]
        h = x_ref[...].astype(jnp.float32)
        idx = 1
        for _ in range(num_hidden):
            w_ref, gamma_ref, beta_ref = refs[idx], refs[idx + 1], refs[idx + 2]
            idx += 3
            # Linear (bias omitted: it cancels exactly under training-mode BN mean subtraction).
            y = jnp.dot(h.astype(MXU_DTYPE), w_ref[...],
                        preferred_element_type=jnp.float32)                 # [N, Hp] f32
            # BatchNorm1d, training mode: per-batch mean + biased variance, then affine.
            n = y.shape[0]
            mean = jnp.sum(y, axis=0, keepdims=True) / n
            centered = y - mean
            var = jnp.sum(centered * centered, axis=0, keepdims=True) / n
            normed = centered * jax.lax.rsqrt(var + BN_EPS)
            h = jnp.maximum(gamma_ref[...] * normed + beta_ref[...], 0.0)   # ReLU
        w_ref, b_ref = refs[idx], refs[idx + 1]
        out = jnp.dot(h.astype(MXU_DTYPE), w_ref[...],
                      preferred_element_type=jnp.float32) + b_ref[...]
        o_ref[...] = out.astype(o_ref.dtype)

    return kernel


def init_student_net_params(key, num_layers, input_dim, hidden_dim, output_dim):
    """PyTorch-style (uniform +-1/sqrt(fan_in)) init. Weights stored [in, out] in bf16, zero-padded
    so every layer's output width is a multiple of 128 lanes. Hidden-layer biases are not
    materialized because they cancel under training-mode BatchNorm."""
    if num_layers < 1:
        raise ValueError("number of layers should be positive!")
    out_p = _round_up(output_dim, LANE)
    hid_p = _round_up(hidden_dim, LANE) if num_layers > 1 else None

    if num_layers == 1:
        dims = [(input_dim, input_dim, output_dim, out_p)]
    else:
        dims = [(input_dim, input_dim, hidden_dim, hid_p)]
        dims += [(hidden_dim, hid_p, hidden_dim, hid_p)] * (num_layers - 2)
        dims += [(hidden_dim, hid_p, output_dim, out_p)]

    ws = []
    final_b = None
    for layer, (din, din_p, dout, dout_p) in enumerate(dims):
        key, kw, kb = jax.random.split(key, 3)
        bound = 1.0 / (din ** 0.5)
        w = jax.random.uniform(kw, (din, dout), jnp.float32, -bound, bound)
        w = jnp.zeros((din_p, dout_p), jnp.float32).at[:din, :dout].set(w)
        ws.append(w.astype(MXU_DTYPE))
        if layer == num_layers - 1:
            b = jax.random.uniform(kb, (1, dout), jnp.float32, -bound, bound)
            final_b = jnp.zeros((1, dout_p), jnp.float32).at[:, :dout].set(b)

    gammas = [jnp.ones((1, hid_p), jnp.float32) for _ in range(num_layers - 1)]
    betas = [jnp.zeros((1, hid_p), jnp.float32) for _ in range(num_layers - 1)]
    return {"linear_ws": ws, "final_b": final_b, "bn_gammas": gammas, "bn_betas": betas}


@functools.partial(jax.jit, static_argnames=("output_dim",))
def student_net_forward(params, x, output_dim):
    num_layers = len(params["linear_ws"])
    n = x.shape[0]
    out_p = params["final_b"].shape[1]

    inputs = [x]
    for layer in range(num_layers - 1):
        inputs += [params["linear_ws"][layer],
                   params["bn_gammas"][layer],
                   params["bn_betas"][layer]]
    inputs += [params["linear_ws"][-1], params["final_b"]]

    out_padded = pl.pallas_call(
        _build_fused_kernel(num_layers),
        out_shape=jax.ShapeDtypeStruct((n, out_p), jnp.float32),
        grid=(),
        in_specs=[_full_spec(a.shape) for a in inputs],
        out_specs=_full_spec((n, out_p)),
    )(*inputs)
    return out_padded[:, :output_dim]


def _ref_forward(params, x):
    """Pure-JAX reference mirroring the kernel math (bf16 MXU operands, f32 everything else)."""
    num_layers = len(params["linear_ws"])
    h = x.astype(jnp.float32)
    for layer in range(num_layers - 1):
        w = params["linear_ws"][layer]
        y = jnp.dot(h.astype(MXU_DTYPE), w, preferred_element_type=jnp.float32)
        n = y.shape[0]
        mean = jnp.sum(y, axis=0, keepdims=True) / n
        centered = y - mean
        var = jnp.sum(centered * centered, axis=0, keepdims=True) / n
        normed = centered * jax.lax.rsqrt(var + BN_EPS)
        h = jnp.maximum(params["bn_gammas"][layer] * normed + params["bn_betas"][layer], 0.0)
    w = params["linear_ws"][-1]
    return jnp.dot(h.astype(MXU_DTYPE), w, preferred_element_type=jnp.float32) + params["final_b"]


if __name__ == "__main__":
    num_layers = 3
    input_dim = 16
    hidden_dim = 32
    output_dim = 8
    batch = 8

    key = jax.random.PRNGKey(0)
    key, kx = jax.random.split(key)
    x = jax.random.normal(kx, (batch, input_dim), jnp.float32)

    params = init_student_net_params(key, num_layers, input_dim, hidden_dim, output_dim)

    out = student_net_forward(params, x, output_dim)
    jax.block_until_ready(out)

    ref = _ref_forward(params, x)[:, :output_dim]
    assert out.shape == (batch, output_dim)
    assert bool(jnp.all(jnp.isfinite(out)))
    assert float(jnp.max(jnp.abs(out - ref))) < 1e-4

    print("KERNEL_OK")
</pallas_src>

<mosaic_0001>
module attributes {stable_mosaic.version = 11 : i64} {
  func.func @kernel(%arg0: memref<8x16xf32, #tpu.memory_space<vmem>>, %arg1: memref<16x128xbf16, #tpu.memory_space<vmem>>, %arg2: memref<1x128xf32, #tpu.memory_space<vmem>>, %arg3: memref<1x128xf32, #tpu.memory_space<vmem>>, %arg4: memref<128x128xbf16, #tpu.memory_space<vmem>>, %arg5: memref<1x128xf32, #tpu.memory_space<vmem>>, %arg6: memref<1x128xf32, #tpu.memory_space<vmem>>, %arg7: memref<128x128xbf16, #tpu.memory_space<vmem>>, %arg8: memref<1x128xf32, #tpu.memory_space<vmem>>, %arg9: memref<8x128xf32, #tpu.memory_space<vmem>>) attributes {dimension_semantics = [], scalar_prefetch = 0 : i64, scratch_operands = 0 : i64, tpu.core_type = #tpu.core_type<tc>} {
    %c0 = arith.constant 0 : index
    %c0_0 = arith.constant 0 : index
    %0 = vector.load %arg0[%c0, %c0_0] : memref<8x16xf32, #tpu.memory_space<vmem>>, vector<8x16xf32>
    %1 = arith.truncf %0 : vector<8x16xf32> to vector<8x16xbf16>
    %c0_1 = arith.constant 0 : index
    %c0_2 = arith.constant 0 : index
    %2 = vector.load %arg1[%c0_1, %c0_2] : memref<16x128xbf16, #tpu.memory_space<vmem>>, vector<16x128xbf16>
    %cst = arith.constant dense<0.000000e+00> : vector<8x128xf32>
    %3 = tpu.matmul %1, %2, %cst {dimension_numbers = #tpu.dot_dimension_numbers<[1], [0], [0], [1], [0, 0, 1, 1], [], []>} : vector<8x16xbf16>, vector<16x128xbf16>, vector<8x128xf32> -> vector<8x128xf32>
    %cst_3 = arith.constant dense<0.000000e+00> : vector<128xf32>
    %4 = vector.multi_reduction <add>, %3, %cst_3 [0] : vector<8x128xf32> to vector<128xf32>
    %5 = vector.shape_cast %4 : vector<128xf32> to vector<1x128xf32>
    %cst_4 = arith.constant 8.000000e+00 : f32
    %6 = vector.broadcast %cst_4 : f32 to vector<1x128xf32>
    %7 = arith.divf %5, %6 : vector<1x128xf32>
    %8 = vector.broadcast %7 : vector<1x128xf32> to vector<8x128xf32>
    %9 = arith.subf %3, %8 : vector<8x128xf32>
    %10 = arith.mulf %9, %9 : vector<8x128xf32>
    %cst_5 = arith.constant dense<0.000000e+00> : vector<128xf32>
    %11 = vector.multi_reduction <add>, %10, %cst_5 [0] : vector<8x128xf32> to vector<128xf32>
    %12 = vector.shape_cast %11 : vector<128xf32> to vector<1x128xf32>
    %cst_6 = arith.constant 8.000000e+00 : f32
    %13 = vector.broadcast %cst_6 : f32 to vector<1x128xf32>
    %14 = arith.divf %12, %13 : vector<1x128xf32>
    %cst_7 = arith.constant 9.99999974E-6 : f32
    %15 = vector.broadcast %cst_7 : f32 to vector<1x128xf32>
    %16 = arith.addf %14, %15 : vector<1x128xf32>
    %17 = math.rsqrt %16 : vector<1x128xf32>
    %18 = vector.broadcast %17 : vector<1x128xf32> to vector<8x128xf32>
    %19 = arith.mulf %9, %18 : vector<8x128xf32>
    %c0_8 = arith.constant 0 : index
    %c0_9 = arith.constant 0 : index
    %20 = vector.load %arg2[%c0_8, %c0_9] : memref<1x128xf32, #tpu.memory_space<vmem>>, vector<1x128xf32>
    %21 = vector.broadcast %20 : vector<1x128xf32> to vector<8x128xf32>
    %22 = arith.mulf %21, %19 : vector<8x128xf32>
    %c0_10 = arith.constant 0 : index
    %c0_11 = arith.constant 0 : index
    %23 = vector.load %arg3[%c0_10, %c0_11] : memref<1x128xf32, #tpu.memory_space<vmem>>, vector<1x128xf32>
    %24 = vector.broadcast %23 : vector<1x128xf32> to vector<8x128xf32>
    %25 = arith.addf %22, %24 : vector<8x128xf32>
    %cst_12 = arith.constant 0.000000e+00 : f32
    %26 = vector.broadcast %cst_12 : f32 to vector<8x128xf32>
    %27 = arith.maximumf %25, %26 : vector<8x128xf32>
    %28 = arith.truncf %27 : vector<8x128xf32> to vector<8x128xbf16>
    %c0_13 = arith.constant 0 : index
    %c0_14 = arith.constant 0 : index
    %29 = vector.load %arg4[%c0_13, %c0_14] : memref<128x128xbf16, #tpu.memory_space<vmem>>, vector<128x128xbf16>
    %cst_15 = arith.constant dense<0.000000e+00> : vector<8x128xf32>
    %30 = tpu.matmul %28, %29, %cst_15 {dimension_numbers = #tpu.dot_dimension_numbers<[1], [0], [0], [1], [0, 0, 1, 1], [], []>} : vector<8x128xbf16>, vector<128x128xbf16>, vector<8x128xf32> -> vector<8x128xf32>
    %cst_16 = arith.constant dense<0.000000e+00> : vector<128xf32>
    %31 = vector.multi_reduction <add>, %30, %cst_16 [0] : vector<8x128xf32> to vector<128xf32>
    %32 = vector.shape_cast %31 : vector<128xf32> to vector<1x128xf32>
    %cst_17 = arith.constant 8.000000e+00 : f32
    %33 = vector.broadcast %cst_17 : f32 to vector<1x128xf32>
    %34 = arith.divf %32, %33 : vector<1x128xf32>
    %35 = vector.broadcast %34 : vector<1x128xf32> to vector<8x128xf32>
    %36 = arith.subf %30, %35 : vector<8x128xf32>
    %37 = arith.mulf %36, %36 : vector<8x128xf32>
    %cst_18 = arith.constant dense<0.000000e+00> : vector<128xf32>
    %38 = vector.multi_reduction <add>, %37, %cst_18 [0] : vector<8x128xf32> to vector<128xf32>
    %39 = vector.shape_cast %38 : vector<128xf32> to vector<1x128xf32>
    %cst_19 = arith.constant 8.000000e+00 : f32
    %40 = vector.broadcast %cst_19 : f32 to vector<1x128xf32>
    %41 = arith.divf %39, %40 : vector<1x128xf32>
    %cst_20 = arith.constant 9.99999974E-6 : f32
    %42 = vector.broadcast %cst_20 : f32 to vector<1x128xf32>
    %43 = arith.addf %41, %42 : vector<1x128xf32>
    %44 = math.rsqrt %43 : vector<1x128xf32>
    %45 = vector.broadcast %44 : vector<1x128xf32> to vector<8x128xf32>
    %46 = arith.mulf %36, %45 : vector<8x128xf32>
    %c0_21 = arith.constant 0 : index
    %c0_22 = arith.constant 0 : index
    %47 = vector.load %arg5[%c0_21, %c0_22] : memref<1x128xf32, #tpu.memory_space<vmem>>, vector<1x128xf32>
    %48 = vector.broadcast %47 : vector<1x128xf32> to vector<8x128xf32>
    %49 = arith.mulf %48, %46 : vector<8x128xf32>
    %c0_23 = arith.constant 0 : index
    %c0_24 = arith.constant 0 : index
    %50 = vector.load %arg6[%c0_23, %c0_24] : memref<1x128xf32, #tpu.memory_space<vmem>>, vector<1x128xf32>
    %51 = vector.broadcast %50 : vector<1x128xf32> to vector<8x128xf32>
    %52 = arith.addf %49, %51 : vector<8x128xf32>
    %cst_25 = arith.constant 0.000000e+00 : f32
    %53 = vector.broadcast %cst_25 : f32 to vector<8x128xf32>
    %54 = arith.maximumf %52, %53 : vector<8x128xf32>
    %55 = arith.truncf %54 : vector<8x128xf32> to vector<8x128xbf16>
    %c0_26 = arith.constant 0 : index
    %c0_27 = arith.constant 0 : index
    %56 = vector.load %arg7[%c0_26, %c0_27] : memref<128x128xbf16, #tpu.memory_space<vmem>>, vector<128x128xbf16>
    %cst_28 = arith.constant dense<0.000000e+00> : vector<8x128xf32>
    %57 = tpu.matmul %55, %56, %cst_28 {dimension_numbers = #tpu.dot_dimension_numbers<[1], [0], [0], [1], [0, 0, 1, 1], [], []>} : vector<8x128xbf16>, vector<128x128xbf16>, vector<8x128xf32> -> vector<8x128xf32>
    %c0_29 = arith.constant 0 : index
    %c0_30 = arith.constant 0 : index
    %58 = vector.load %arg8[%c0_29, %c0_30] : memref<1x128xf32, #tpu.memory_space<vmem>>, vector<1x128xf32>
    %59 = vector.broadcast %58 : vector<1x128xf32> to vector<8x128xf32>
    %60 = arith.addf %57, %59 : vector<8x128xf32>
    %c0_31 = arith.constant 0 : index
    %c0_32 = arith.constant 0 : index
    %61 = vector.load %arg9[%c0_31, %c0_32] : memref<8x128xf32, #tpu.memory_space<vmem>>, vector<8x128xf32>
    tpu.vector_store %arg9[%c0_31, %c0_32], %60 {strides = array<i32>} : memref<8x128xf32, #tpu.memory_space<vmem>>, vector<8x128xf32>,
    return
  }
}

</mosaic_0001>

<llo_original>
// kernel: student_net_forward.1
$region0: #{student_net_forward.1}
  #allocation0 [shape = 'u32[]', space=smem, size = 0x4, offset = 0x4, fixed_abs, tag = 'smem constant byte address 0x4 - core index']
  #allocation1 [shape = 'u32[144,128]{1,0:T(1,128)}', space=vmem, size = 0x12000, scoped, tag = 'internal scratch']
  %s0 = inlined_call_operand.vmem [shape: f32[8,16], index: 0, kind: input, shape index: {}]
  %s1 = inlined_call_operand.vmem [shape: bf16[16,128], index: 1, kind: input, shape index: {}]
  %s2 = inlined_call_operand.vmem [shape: f32[1,128], index: 2, kind: input, shape index: {}]
  %s3 = inlined_call_operand.hbm [shape: f32[1,128], index: 3, kind: input, shape index: {}]
  %s4 = inlined_call_operand.hbm [shape: bf16[128,128], index: 4, kind: input, shape index: {}]
  %s5 = inlined_call_operand.vmem [shape: f32[1,128], index: 5, kind: input, shape index: {}]
  %s6 = inlined_call_operand.hbm [shape: f32[1,128], index: 6, kind: input, shape index: {}]
  %s7 = inlined_call_operand.hbm [shape: bf16[128,128], index: 7, kind: input, shape index: {}]
  %s8 = inlined_call_operand.hbm [shape: f32[1,128], index: 8, kind: input, shape index: {}]
  %s9 = inlined_call_operand.hbm [shape: f32[8,128], index: 9, kind: output, shape index: {}]
  %s10 = sld [smem:[#allocation0]]
  $region66: #{student_net_forward.1} parent=0
    _
  %s12 = ssub.s32 1, %s10
  %s13 = scalar_select 0, %s12, %s10
  $region1: #{student_net_forward.1} parent=0
    #allocation2 [shape = 'u8[512]{0}', space=vmem, size = 0x400, scoped, tag = 'input window, operand 3, single buffered']
    #allocation3 [shape = 's32[1]{0}', space=sflag, size = 0x4, scoped, tag = 'scoped memory for student_net_forward.1']
    #allocation4 [shape = 's32[1]{0}', space=sflag, size = 0x4, scoped, tag = 'scoped memory for student_net_forward.1']
    #allocation5 [shape = 'u8[32768]{0}', space=vmem, size = 0x8000, scoped, tag = 'input window, operand 4, single buffered']
    #allocation6 [shape = 's32[1]{0}', space=sflag, size = 0x4, scoped, tag = 'scoped memory for student_net_forward.1']
    #allocation7 [shape = 'u8[512]{0}', space=vmem, size = 0x400, scoped, tag = 'input window, operand 6, single buffered']
    #allocation8 [shape = 'u8[32768]{0}', space=vmem, size = 0x8000, scoped, tag = 'input window, operand 7, single buffered']
    #allocation9 [shape = 's32[1]{0}', space=sflag, size = 0x4, scoped, tag = 'scoped memory for student_net_forward.1']
    #allocation10 [shape = 'u8[512]{0}', space=vmem, size = 0x400, scoped, tag = 'input window, operand 8, single buffered']
    #allocation11 [shape = 'u8[4096]{0}', space=vmem, size = 0x1000, scoped, tag = 'output window, operand 0, single buffered']
    %14 = vsyncpa [#allocation3], 0
    %15 = vsyncpa [#allocation6], 0
    %16 = vsyncpa [#allocation9], 0
    %17 = vsyncpa [#allocation4], 0
    // Predicated region
    $region2: #{student_net_forward.1} parent=1 // pred_check
      _
    $region3: #{student_net_forward.1} parent=1 // pred_check_branch
      %19 = sbr.rel (0) target = $region5
    $region4: #{student_net_forward.1} parent=1 // pred_region
      _
    $region5: #{student_net_forward.1} parent=1 // pred_fallthru
      _
    // Predicated region
    $region6: #{student_net_forward.1} parent=1 // pred_check
      _
    $region7: #{student_net_forward.1} parent=1 // pred_check_branch
      %21 = sbr.rel (0) target = $region9
    $region8: #{student_net_forward.1} parent=1 // pred_region
      _
    $region9: #{student_net_forward.1} parent=1 // pred_fallthru
      _
    // Predicated region
    $region10: #{student_net_forward.1} parent=1 // pred_check
      _
    $region11: #{student_net_forward.1} parent=1 // pred_check_branch
      %23 = sbr.rel (0) target = $region13
    $region12: #{student_net_forward.1} parent=1 // pred_region
      _
    $region13: #{student_net_forward.1} parent=1 // pred_fallthru
      _
    // Predicated region
    $region14: #{student_net_forward.1} parent=1 // pred_check
      _
    $region15: #{student_net_forward.1} parent=1 // pred_check_branch
      %25 = sbr.rel (0) target = $region17
    $region16: #{student_net_forward.1} parent=1 // pred_region
      %s27 = ssub.s32 16, 16
      %28 = vsyncadd [#allocation3], %s27
      %s30 = sshll.u32 [#allocation2], 4
      %s31 = int_to_ptr.vmem [resolvable:$true] %s30
      %33 = dma.hbm_to_vmem [thread:$0]  %s3, 16, %s31, [#allocation3]
    $region17: #{student_net_forward.1} parent=1 // pred_fallthru
      _
    // Predicated region
    $region18: #{student_net_forward.1} parent=1 // pred_check
      _
    $region19: #{student_net_forward.1} parent=1 // pred_check_branch
      %35 = sbr.rel (0) target = $region21
    $region20: #{student_net_forward.1} parent=1 // pred_region
      %s37 = ssub.s32 1024, 1024
      %38 = vsyncadd [#allocation6], %s37
      %s39 = sshll.u32 [#allocation5], 4
      %s40 = int_to_ptr.vmem [resolvable:$true] %s39
      %45 = dma.hbm_to_vmem [thread:$0]  %s4, 1024, %s40, [#allocation6], 64, 64, 4
    $region21: #{student_net_forward.1} parent=1 // pred_fallthru
      _
    // Predicated region
    $region22: #{student_net_forward.1} parent=1 // pred_check
      _
    $region23: #{student_net_forward.1} parent=1 // pred_check_branch
      %47 = sbr.rel (0) target = $region25
    $region24: #{student_net_forward.1} parent=1 // pred_region
      _
    $region25: #{student_net_forward.1} parent=1 // pred_fallthru
      _
    // Predicated region
    $region26: #{student_net_forward.1} parent=1 // pred_check
      _
    $region27: #{student_net_forward.1} parent=1 // pred_check_branch
      %49 = sbr.rel (0) target = $region29
    $region28: #{student_net_forward.1} parent=1 // pred_region
      %s51 = ssub.s32 16, 16
      %52 = vsyncadd [#allocation6], %s51
      %s54 = sshll.u32 [#allocation7], 4
      %s55 = int_to_ptr.vmem [resolvable:$true] %s54
      %57 = dma.hbm_to_vmem [thread:$0]  %s6, 16, %s55, [#allocation6]
    $region29: #{student_net_forward.1} parent=1 // pred_fallthru
      _
    // Predicated region
    $region30: #{student_net_forward.1} parent=1 // pred_check
      _
    $region31: #{student_net_forward.1} parent=1 // pred_check_branch
      %59 = sbr.rel (0) target = $region33
    $region32: #{student_net_forward.1} parent=1 // pred_region
      %s61 = ssub.s32 1024, 1024
      %62 = vsyncadd [#allocation9], %s61
      %s63 = sshll.u32 [#allocation8], 4
      %s64 = int_to_ptr.vmem [resolvable:$true] %s63
      %69 = dma.hbm_to_vmem [thread:$0]  %s7, 1024, %s64, [#allocation9], 64, 64, 4
    $region33: #{student_net_forward.1} parent=1 // pred_fallthru
      _
    // Predicated region
    $region34: #{student_net_forward.1} parent=1 // pred_check
      _
    $region35: #{student_net_forward.1} parent=1 // pred_check_branch
      %71 = sbr.rel (0) target = $region37
    $region36: #{student_net_forward.1} parent=1 // pred_region
      %s73 = ssub.s32 16, 16
      %74 = vsyncadd [#allocation9], %s73
      %s76 = sshll.u32 [#allocation10], 4
      %s77 = int_to_ptr.vmem [resolvable:$true] %s76
      %79 = dma.hbm_to_vmem [thread:$0]  %s8, 16, %s77, [#allocation9]
    $region37: #{student_net_forward.1} parent=1 // pred_fallthru
      _
    // Predicated region
    $region38: #{student_net_forward.1} parent=1 // pred_check
      _
    $region39: #{student_net_forward.1} parent=1 // pred_check_branch
      %81 = sbr.rel (0) target = $region41
    $region40: #{student_net_forward.1} parent=1 // pred_region
      %82 = dma.done [#allocation3], 16
    $region41: #{student_net_forward.1} parent=1 // pred_fallthru
      _
    // Predicated region
    $region42: #{student_net_forward.1} parent=1 // pred_check
      _
    $region43: #{student_net_forward.1} parent=1 // pred_check_branch
      %84 = sbr.rel (0) target = $region45
    $region44: #{student_net_forward.1} parent=1 // pred_region
      %85 = dma.done [#allocation6], 1024
    $region45: #{student_net_forward.1} parent=1 // pred_fallthru
      _
    // Predicated region
    $region46: #{student_net_forward.1} parent=1 // pred_check
      _
    $region47: #{student_net_forward.1} parent=1 // pred_check_branch
      %87 = sbr.rel (0) target = $region49
    $region48: #{student_net_forward.1} parent=1 // pred_region
      %88 = dma.done [#allocation6], 16
    $region49: #{student_net_forward.1} parent=1 // pred_fallthru
      _
    // Predicated region
    $region50: #{student_net_forward.1} parent=1 // pred_check
      _
    $region51: #{student_net_forward.1} parent=1 // pred_check_branch
      %90 = sbr.rel (0) target = $region53
    $region52: #{student_net_forward.1} parent=1 // pred_region
      %91 = dma.done [#allocation9], 1024
    $region53: #{student_net_forward.1} parent=1 // pred_fallthru
      _
    // Predicated region
    $region54: #{student_net_forward.1} parent=1 // pred_check
      _
    $region55: #{student_net_forward.1} parent=1 // pred_check_branch
      %93 = sbr.rel (0) target = $region57
    $region56: #{student_net_forward.1} parent=1 // pred_region
      %94 = dma.done [#allocation9], 16
    $region57: #{student_net_forward.1} parent=1 // pred_fallthru
      _
    %v96 = vld [vmem:[%s0] sm:$0xff]
    %v97 = vpack.c.bf16 %v96, %v96
    %v98 = vld [vmem:[%s1] sm:$0xf]
    %v99 = vld [vmem:[%s1 + $0x4] sm:$0xf]
    %v102 = vunpack.c.l.b16 %v98
    %v103 = vunpack.c.l.b16 %v99
    %v104 = vpack.c.b16 %v103, %v102
    %vm106 = vcmask 130048
    %v108 = vsel %vm106, %v97, 0
    %110 = vmatprep.subr.bf16.mxu0 0
    %111 = vmatpush1.bf16.msra.mxu0 %v104
    %112 = vmatprep.subr.bf16.mxu0 0
    %113 = vmatpush1.bf16.msra.mxu0 0
    %114 = vmatprep.subr.bf16.mxu0 0
    %115 = vmatpush1.bf16.msra.mxu0 0
    %116 = vmatprep.subr.bf16.mxu0 0
    %117 = vmatpush1.bf16.msra.mxu0 0
    %118 = vmatprep.subr.bf16.mxu0 0
    %119 = vmatpush1.bf16.msra.mxu0 0
    %120 = vmatprep.subr.bf16.mxu0 0
    %121 = vmatpush1.bf16.msra.mxu0 0
    %122 = vmatprep.subr.bf16.mxu0 0
    %123 = vmatpush1.bf16.msra.mxu0 0
    %124 = vmatprep.subr.bf16.mxu0 0
    %125 = vmatpush1.bf16.msra.mxu0 0
    %126 = vmatprep.subr.bf16.mxu0 0
    %127 = vmatpush1.bf16.msra.mxu0 0
    %128 = vmatprep.subr.bf16.mxu0 0
    %129 = vmatpush1.bf16.msra.mxu0 0
    %130 = vmatprep.subr.bf16.mxu0 0
    %131 = vmatpush1.bf16.msra.mxu0 0
    %132 = vmatprep.subr.bf16.mxu0 0
    %133 = vmatpush1.bf16.msra.mxu0 0
    %134 = vmatprep.subr.bf16.mxu0 0
    %135 = vmatpush1.bf16.msra.mxu0 0
    %136 = vmatprep.subr.bf16.mxu0 0
    %137 = vmatpush1.bf16.msra.mxu0 0
    %138 = vmatprep.subr.bf16.mxu0 0
    %139 = vmatpush1.bf16.msra.mxu0 0
    %140 = vmatprep.subr.bf16.mxu0 0
    %141 = vmatpush1.bf16.msra.mxu0 0
    %142 = vmatprep.mubr.bf16.mxu0 0
    %143 = vmatmul.mubr.bf16.gmra.mrb[0].mxu0 %v108
    %v144 = vpop.f32.mrb[0].mxu0
    %v145 = vadd.f32 0.0, %v144
    %v146 = vpop.f32.mrb[0].mxu0
    %v147 = vpop.f32.mrb[0].mxu0
    %v148 = vpop.f32.mrb[0].mxu0
    %149 = vdwg.mxu0
    %v150 = vrot.slane %v145, 4
    %v151 = vadd.f32 %v145, %v150
    %v152 = vrot.slane %v151, 2
    %v153 = vadd.f32 %v151, %v152
    %v154 = vrot.slane %v153, 1
    %v155 = vadd.f32 %v153, %v154
    %v156 = vrcp.pop 8.0
    %v157 = vmul.f32 %v155, %v156
    %v158 = vsub.f32 %v145, %v157
    %v159 = vmul.f32 %v158, %v158
    %v160 = vrot.slane %v159, 4
    %v161 = vadd.f32 %v159, %v160
    %v162 = vrot.slane %v161, 2
    %v163 = vadd.f32 %v161, %v162
    %v164 = vrot.slane %v163, 1
    %v165 = vadd.f32 %v163, %v164
    %v166 = vmul.f32 %v165, %v156
    %v167 = vadd.f32 %v166, 1e-05
    %v168 = vrsqrt.pop %v167
    %v169 = vmul.f32 %v158, %v168
    %v170 = vld [vmem:[%s2] sm:$0x1]
    %v172 = vlaneseq
    %v173 = vshrl.u32 %v172, 7
    %v174 = vsub.s32 0, %v173
    %v175 = vrot.slane %v170, %v174
    %v177 = vmul.f32 %v175, %v169
    %v178 = vld [vmem:[#allocation2] sm:$0x1]
    %v180 = vlaneseq
    %v181 = vshrl.u32 %v180, 7
    %v182 = vsub.s32 0, %v181
    %v183 = vrot.slane %v178, %v182
    %v185 = vadd.f32 %v177, %v183
    %v186 = vmax.f32 %v185, 0.0
    %v187 = vpack.c.bf16 %v186, %v186
    %v188 = vld [vmem:[#allocation5] sm:$0xf]
    %v189 = vld [vmem:[#allocation5 + $0x4] sm:$0xf]
    %v190 = vld [vmem:[#allocation5 + $0x8] sm:$0xf]
    %v191 = vld [vmem:[#allocation5 + $0xc] sm:$0xf]
    %v192 = vld [vmem:[#allocation5 + $0x10] sm:$0xf]
    %v193 = vld [vmem:[#allocation5 + $0x14] sm:$0xf]
    %v194 = vld [vmem:[#allocation5 + $0x18] sm:$0xf]
    %v195 = vld [vmem:[#allocation5 + $0x1c] sm:$0xf]
    %v196 = vld [vmem:[#allocation5 + $0x20] sm:$0xf]
    %v197 = vld [vmem:[#allocation5 + $0x24] sm:$0xf]
    %v198 = vld [vmem:[#allocation5 + $0x28] sm:$0xf]
    %v199 = vld [vmem:[#allocation5 + $0x2c] sm:$0xf]
    %v200 = vld [vmem:[#allocation5 + $0x30] sm:$0xf]
    %v201 = vld [vmem:[#allocation5 + $0x34] sm:$0xf]
    %v202 = vld [vmem:[#allocation5 + $0x38] sm:$0xf]
    %v203 = vld [vmem:[#allocation5 + $0x3c] sm:$0xf]
    %v220 = vunpack.c.l.b16 %v188
    %v221 = vunpack.c.l.b16 %v189
    %v222 = vunpack.c.l.b16 %v190
    %v223 = vunpack.c.l.b16 %v191
    %v224 = vunpack.c.l.b16 %v192
    %v225 = vunpack.c.l.b16 %v193
    %v226 = vunpack.c.l.b16 %v194
    %v227 = vunpack.c.l.b16 %v195
    %v228 = vunpack.c.l.b16 %v196
    %v229 = vunpack.c.l.b16 %v197
    %v230 = vunpack.c.l.b16 %v198
    %v231 = vunpack.c.l.b16 %v199
    %v232 = vunpack.c.l.b16 %v200
    %v233 = vunpack.c.l.b16 %v201
    %v234 = vunpack.c.l.b16 %v202
    %v235 = vunpack.c.l.b16 %v203
    %v236 = vpack.c.b16 %v221, %v220
    %v237 = vpack.c.b16 %v223, %v222
    %v238 = vpack.c.b16 %v225, %v224
    %v239 = vpack.c.b16 %v227, %v226
    %v240 = vpack.c.b16 %v229, %v228
    %v241 = vpack.c.b16 %v231, %v230
    %v242 = vpack.c.b16 %v233, %v232
    %v243 = vpack.c.b16 %v235, %v234
    %252 = vmatprep.subr.bf16.mxu0 0
    %253 = vmatpush1.bf16.msra.mxu0 %v236
    %254 = vmatprep.subr.bf16.mxu0 0
    %255 = vmatpush1.bf16.msra.mxu0 %v237
    %256 = vmatprep.subr.bf16.mxu0 0
    %257 = vmatpush1.bf16.msra.mxu0 %v238
    %258 = vmatprep.subr.bf16.mxu0 0
    %259 = vmatpush1.bf16.msra.mxu0 %v239
    %260 = vmatprep.subr.bf16.mxu0 0
    %261 = vmatpush1.bf16.msra.mxu0 %v240
    %262 = vmatprep.subr.bf16.mxu0 0
    %263 = vmatpush1.bf16.msra.mxu0 %v241
    %264 = vmatprep.subr.bf16.mxu0 0
    %265 = vmatpush1.bf16.msra.mxu0 %v242
    %266 = vmatprep.subr.bf16.mxu0 0
    %267 = vmatpush1.bf16.msra.mxu0 %v243
    %268 = vmatprep.subr.bf16.mxu0 0
    %269 = vmatpush1.bf16.msra.mxu0 0
    %270 = vmatprep.subr.bf16.mxu0 0
    %271 = vmatpush1.bf16.msra.mxu0 0
    %272 = vmatprep.subr.bf16.mxu0 0
    %273 = vmatpush1.bf16.msra.mxu0 0
    %274 = vmatprep.subr.bf16.mxu0 0
    %275 = vmatpush1.bf16.msra.mxu0 0
    %276 = vmatprep.subr.bf16.mxu0 0
    %277 = vmatpush1.bf16.msra.mxu0 0
    %278 = vmatprep.subr.bf16.mxu0 0
    %279 = vmatpush1.bf16.msra.mxu0 0
    %280 = vmatprep.subr.bf16.mxu0 0
    %281 = vmatpush1.bf16.msra.mxu0 0
    %282 = vmatprep.subr.bf16.mxu0 0
    %283 = vmatpush1.bf16.msra.mxu0 0
    %284 = vmatprep.mubr.bf16.mxu0 0
    %285 = vmatmul.mubr.bf16.gmra.mrb[0].mxu0 %v187
    %v286 = vpop.f32.mrb[0].mxu0
    %v287 = vadd.f32 0.0, %v286
    %v288 = vpop.f32.mrb[0].mxu0
    %v289 = vpop.f32.mrb[0].mxu0
    %v290 = vpop.f32.mrb[0].mxu0
    %291 = vdwg.mxu0
    %v292 = vrot.slane %v287, 4
    %v293 = vadd.f32 %v287, %v292
    %v294 = vrot.slane %v293, 2
    %v295 = vadd.f32 %v293, %v294
    %v296 = vrot.slane %v295, 1
    %v297 = vadd.f32 %v295, %v296
    %v298 = vmul.f32 %v297, %v156
    %v299 = vsub.f32 %v287, %v298
    %v300 = vmul.f32 %v299, %v299
    %v301 = vrot.slane %v300, 4
    %v302 = vadd.f32 %v300, %v301
    %v303 = vrot.slane %v302, 2
    %v304 = vadd.f32 %v302, %v303
    %v305 = vrot.slane %v304, 1
    %v306 = vadd.f32 %v304, %v305
    %v307 = vmul.f32 %v306, %v156
    %v308 = vadd.f32 %v307, 1e-05
    %v309 = vrsqrt.pop %v308
    %v310 = vmul.f32 %v299, %v309
    %v311 = vld [vmem:[%s5] sm:$0x1]
    %v313 = vlaneseq
    %v314 = vshrl.u32 %v313, 7
    %v315 = vsub.s32 0, %v314
    %v316 = vrot.slane %v311, %v315
    %v318 = vmul.f32 %v316, %v310
    %v319 = vld [vmem:[#allocation7] sm:$0x1]
    %v321 = vlaneseq
    %v322 = vshrl.u32 %v321, 7
    %v323 = vsub.s32 0, %v322
    %v324 = vrot.slane %v319, %v323
    %v326 = vadd.f32 %v318, %v324
    %v327 = vmax.f32 %v326, 0.0
    %v328 = vpack.c.bf16 %v327, %v327
    %v329 = vld [vmem:[#allocation8] sm:$0xf]
    %v330 = vld [vmem:[#allocation8 + $0x4] sm:$0xf]
    %v331 = vld [vmem:[#allocation8 + $0x8] sm:$0xf]
    %v332 = vld [vmem:[#allocation8 + $0xc] sm:$0xf]
    %v333 = vld [vmem:[#allocation8 + $0x10] sm:$0xf]
    %v334 = vld [vmem:[#allocation8 + $0x14] sm:$0xf]
    %v335 = vld [vmem:[#allocation8 + $0x18] sm:$0xf]
    %v336 = vld [vmem:[#allocation8 + $0x1c] sm:$0xf]
    %v337 = vld [vmem:[#allocation8 + $0x20] sm:$0xf]
    %v338 = vld [vmem:[#allocation8 + $0x24] sm:$0xf]
    %v339 = vld [vmem:[#allocation8 + $0x28] sm:$0xf]
    %v340 = vld [vmem:[#allocation8 + $0x2c] sm:$0xf]
    %v341 = vld [vmem:[#allocation8 + $0x30] sm:$0xf]
    %v342 = vld [vmem:[#allocation8 + $0x34] sm:$0xf]
    %v343 = vld [vmem:[#allocation8 + $0x38] sm:$0xf]
    %v344 = vld [vmem:[#allocation8 + $0x3c] sm:$0xf]
    %v345 = vld [vmem:[#allocation10] sm:$0x1]
    %v347 = vlaneseq
    %v348 = vshrl.u32 %v347, 7
    %v349 = vsub.s32 0, %v348
    %v350 = vrot.slane %v345, %v349
    %v368 = vunpack.c.l.b16 %v329
    %v369 = vunpack.c.l.b16 %v330
    %v370 = vunpack.c.l.b16 %v331
    %v371 = vunpack.c.l.b16 %v332
    %v372 = vunpack.c.l.b16 %v333
    %v373 = vunpack.c.l.b16 %v334
    %v374 = vunpack.c.l.b16 %v335
    %v375 = vunpack.c.l.b16 %v336
    %v376 = vunpack.c.l.b16 %v337
    %v377 = vunpack.c.l.b16 %v338
    %v378 = vunpack.c.l.b16 %v339
    %v379 = vunpack.c.l.b16 %v340
    %v380 = vunpack.c.l.b16 %v341
    %v381 = vunpack.c.l.b16 %v342
    %v382 = vunpack.c.l.b16 %v343
    %v383 = vunpack.c.l.b16 %v344
    %v384 = vpack.c.b16 %v369, %v368
    %v385 = vpack.c.b16 %v371, %v370
    %v386 = vpack.c.b16 %v373, %v372
    %v387 = vpack.c.b16 %v375, %v374
    %v388 = vpack.c.b16 %v377, %v376
    %v389 = vpack.c.b16 %v379, %v378
    %v390 = vpack.c.b16 %v381, %v380
    %v391 = vpack.c.b16 %v383, %v382
    %400 = vmatprep.subr.bf16.mxu0 0
    %401 = vmatpush1.bf16.msra.mxu0 %v384
    %402 = vmatprep.subr.bf16.mxu0 0
    %403 = vmatpush1.bf16.msra.mxu0 %v385
    %404 = vmatprep.subr.bf16.mxu0 0
    %405 = vmatpush1.bf16.msra.mxu0 %v386
    %406 = vmatprep.subr.bf16.mxu0 0
    %407 = vmatpush1.bf16.msra.mxu0 %v387
    %408 = vmatprep.subr.bf16.mxu0 0
    %409 = vmatpush1.bf16.msra.mxu0 %v388
    %410 = vmatprep.subr.bf16.mxu0 0
    %411 = vmatpush1.bf16.msra.mxu0 %v389
    %412 = vmatprep.subr.bf16.mxu0 0
    %413 = vmatpush1.bf16.msra.mxu0 %v390
    %414 = vmatprep.subr.bf16.mxu0 0
    %415 = vmatpush1.bf16.msra.mxu0 %v391
    %416 = vmatprep.subr.bf16.mxu0 0
    %417 = vmatpush1.bf16.msra.mxu0 0
    %418 = vmatprep.subr.bf16.mxu0 0
    %419 = vmatpush1.bf16.msra.mxu0 0
    %420 = vmatprep.subr.bf16.mxu0 0
    %421 = vmatpush1.bf16.msra.mxu0 0
    %422 = vmatprep.subr.bf16.mxu0 0
    %423 = vmatpush1.bf16.msra.mxu0 0
    %424 = vmatprep.subr.bf16.mxu0 0
    %425 = vmatpush1.bf16.msra.mxu0 0
    %426 = vmatprep.subr.bf16.mxu0 0
    %427 = vmatpush1.bf16.msra.mxu0 0
    %428 = vmatprep.subr.bf16.mxu0 0
    %429 = vmatpush1.bf16.msra.mxu0 0
    %430 = vmatprep.subr.bf16.mxu0 0
    %431 = vmatpush1.bf16.msra.mxu0 0
    %432 = vmatprep.mubr.bf16.mxu0 0
    %433 = vmatmul.mubr.bf16.gmra.mrb[0].mxu0 %v328
    %v434 = vpop.f32.mrb[0].mxu0
    %v435 = vadd.f32 %v350, %v434
    %v436 = vpop.f32.mrb[0].mxu0
    %v437 = vpop.f32.mrb[0].mxu0
    %v438 = vpop.f32.mrb[0].mxu0
    %439 = vdwg.mxu0
    %440 = vst [vmem:[#allocation11] sm:$0xff] %v435
    // Predicated region
    $region58: #{student_net_forward.1} parent=1 // pred_check
      _
    $region59: #{student_net_forward.1} parent=1 // pred_check_branch
      %442 = sbr.rel (0) target = $region61
    $region60: #{student_net_forward.1} parent=1 // pred_region
      %s444 = ssub.s32 128, 128
      %445 = vsyncadd [#allocation4], %s444
      %s447 = sshll.u32 [#allocation11], 4
      %s448 = int_to_ptr.vmem [resolvable:$true] %s447
      %450 = dma.vmem_to_hbm [thread:$0]  %s448, 128, %s9, [#allocation4]
    $region61: #{student_net_forward.1} parent=1 // pred_fallthru
      _
    // Predicated region
    $region62: #{student_net_forward.1} parent=1 // pred_check
      _
    $region63: #{student_net_forward.1} parent=1 // pred_check_branch
      %452 = sbr.rel (0) target = $region65
    $region64: #{student_net_forward.1} parent=1 // pred_region
      %453 = dma.done [#allocation4], 128
    $region65: #{student_net_forward.1} parent=1 // pred_fallthru
      _
    %454 = vsyncpa [#allocation3], 1
    %455 = vsyncpa [#allocation6], 1
    %456 = vsyncpa [#allocation9], 1
    %457 = vsyncpa [#allocation4], 1

</llo_original>
